<compile_context>
chip_gen: v5e
topology: v5e:2x2
jax: 0.10.0
libtpu: 0.0.40
codegen_flags: <defaults>
</compile_context>

<pallas_src>
import functools

import jax
import jax.numpy as jnp
from jax import lax
from jax.experimental import pallas as pl
from jax.experimental.pallas import tpu as pltpu


# ------------------------------ Pallas kernel -------------------------------

def _self_attention_kernel(x_ref, wqkv_ref, bqkv_ref, g_ref, out_ref, attn_ref,
                           *, cq):
    """One batch element of SelfAttention1D.

    x_ref:    (C, L)       activations for this batch element (f32)
    wqkv_ref: (2*Cq+C, C)  fused [wq; wk; wv] 1x1-conv weights (bf16)
    bqkv_ref: (2*Cq+C, 1)  fused [bq; bk; bv] biases (f32)
    g_ref:    (1,)         gamma scalar in SMEM
    out_ref:  (C, L)       gamma * (V attn^T) + x
    attn_ref: (L, L)       softmax attention for this batch element
    """
    x = x_ref[...]                                                   # (C, L) f32

    # Fused q/k/v projection: a single MXU pass (bf16 operands, f32 accumulate).
    qkv = jnp.dot(wqkv_ref[...], x.astype(jnp.bfloat16),
                  preferred_element_type=jnp.float32) + bqkv_ref[...]
    q = qkv[:cq, :]                                                  # (Cq, L)
    k = qkv[cq:2 * cq, :]                                            # (Cq, L)
    v = qkv[2 * cq:, :]                                              # (C,  L)

    # energy[i, j] = <q[:, i], k[:, j]> -- contract the channel axis directly,
    # no materialized transpose. Kept in f32 (feeds exp()).
    energy = lax.dot_general(q, k, (((0,), (0,)), ((), ())),
                             preferred_element_type=jnp.float32)     # (L, L)

    # Numerically-stable softmax over keys; reciprocal goes to the EUP slot.
    energy = energy - jnp.max(energy, axis=-1, keepdims=True)
    p = jnp.exp(energy)
    attn = p * pl.reciprocal(jnp.sum(p, axis=-1, keepdims=True), approx=True)

    # out[c, i] = sum_j v[c, j] * attn[i, j] -- contract the last axes directly
    # (equivalent to bmm(v, attn^T)), bf16 operands, f32 accumulate.
    out = lax.dot_general(v.astype(jnp.bfloat16), attn.astype(jnp.bfloat16),
                          (((1,), (1,)), ((), ())),
                          preferred_element_type=jnp.float32)        # (C, L)

    gamma = g_ref[0]                                                 # SMEM scalar
    out_ref[...] = gamma * out + x
    attn_ref[...] = attn


def self_attention_1d(x, wq, bq, wk, bk, wv, bv, gamma):
    """Pallas SelfAttention1D. x: (B, C, L). Returns (out (B,C,L), attn (B,L,L))."""
    B, C, L = x.shape
    Cq = wq.shape[0]
    Cqkv = 2 * Cq + C

    # Fuse the three 1x1-conv projections into one weight/bias (done once in the
    # wrapper, outside the kernel's serial chain). Weights pre-cast to bf16.
    wqkv = jnp.concatenate([wq, wk, wv], axis=0).astype(jnp.bfloat16)  # (Cqkv, C)
    bqkv = jnp.concatenate([bq, bk, bv], axis=0).reshape(Cqkv, 1)      # (Cqkv, 1)

    kernel = functools.partial(_self_attention_kernel, cq=Cq)

    out, attn = pl.pallas_call(
        kernel,
        grid=(B,),
        in_specs=[
            pl.BlockSpec((None, C, L), lambda b: (b, 0, 0)),           # x[b]
            pl.BlockSpec((Cqkv, C), lambda b: (0, 0)),                 # fused W
            pl.BlockSpec((Cqkv, 1), lambda b: (0, 0)),                 # fused bias
            pl.BlockSpec(memory_space=pltpu.MemorySpace.SMEM),         # gamma
        ],
        out_specs=(
            pl.BlockSpec((None, C, L), lambda b: (b, 0, 0)),           # out[b]
            pl.BlockSpec((None, L, L), lambda b: (b, 0, 0)),           # attn[b]
        ),
        out_shape=(
            jax.ShapeDtypeStruct((B, C, L), jnp.float32),
            jax.ShapeDtypeStruct((B, L, L), jnp.float32),
        ),
        compiler_params=pltpu.CompilerParams(
            dimension_semantics=("parallel",)),
    )(x, wqkv, bqkv, gamma.reshape(1,))

    return out, attn


# ------------------------------ pure-JAX reference --------------------------

def self_attention_1d_reference(x, wq, bq, wk, bk, wv, bv, gamma):
    q = jnp.einsum('oc,bcl->bol', wq, x) + bq[None, :, None]
    k = jnp.einsum('oc,bcl->bol', wk, x) + bk[None, :, None]
    v = jnp.einsum('oc,bcl->bol', wv, x) + bv[None, :, None]
    energy = jnp.einsum('bci,bcj->bij', q, k)          # (B, L, L)
    attn = jax.nn.softmax(energy, axis=-1)
    out = jnp.einsum('bcj,bij->bci', v, attn)          # (B, C, L)
    return gamma[0] * out + x, attn


# ----------------------------------- main ------------------------------------

if __name__ == "__main__":
    key = jax.random.PRNGKey(0)
    kx, kwq, kbq, kwk, kbk, kwv, kbv = jax.random.split(key, 7)

    B, C, L = 2, 64, 64          # C divisible by 8 (Cq = C // 8)
    Cq = C // 8

    x = jax.random.normal(kx, (B, C, L), jnp.float32)
    wq = jax.random.normal(kwq, (Cq, C), jnp.float32) * (1.0 / C) ** 0.5
    bq = jax.random.normal(kbq, (Cq,), jnp.float32) * 0.1
    wk = jax.random.normal(kwk, (Cq, C), jnp.float32) * (1.0 / C) ** 0.5
    bk = jax.random.normal(kbk, (Cq,), jnp.float32) * 0.1
    wv = jax.random.normal(kwv, (C, C), jnp.float32) * (1.0 / C) ** 0.5
    bv = jax.random.normal(kbv, (C,), jnp.float32) * 0.1
    # nn.Parameter(torch.zeros(1)) initializes gamma to 0; use a nonzero value
    # here so the attention branch actually contributes to the output.
    gamma = jnp.full((1,), 0.5, jnp.float32)

    out, attn = jax.jit(self_attention_1d)(x, wq, bq, wk, bk, wv, bv, gamma)
    jax.block_until_ready((out, attn))

    out_ref, attn_ref = self_attention_1d_reference(x, wq, bq, wk, bk, wv, bv,
                                                    gamma)

    assert out.shape == (B, C, L), out.shape
    assert attn.shape == (B, L, L), attn.shape
    assert bool(jnp.all(jnp.isfinite(out))) and bool(jnp.all(jnp.isfinite(attn)))
    assert bool(jnp.allclose(attn, attn_ref, rtol=2e-2, atol=2e-2)), \
        float(jnp.max(jnp.abs(attn - attn_ref)))
    assert bool(jnp.allclose(out, out_ref, rtol=2e-2, atol=2e-2)), \
        float(jnp.max(jnp.abs(out - out_ref)))
    print("KERNEL_OK")
</pallas_src>

<mosaic_0001>
module attributes {stable_mosaic.version = 11 : i64} {
  func.func @_self_attention_kernel(%arg0: i32, %arg1: memref<1x64x64xf32, #tpu.memory_space<vmem>>, %arg2: memref<80x64xbf16, #tpu.memory_space<vmem>>, %arg3: memref<80x1xf32, #tpu.memory_space<vmem>>, %arg4: memref<1xf32, #tpu.memory_space<smem>>, %arg5: memref<1x64x64xf32, #tpu.memory_space<vmem>>, %arg6: memref<1x64x64xf32, #tpu.memory_space<vmem>>) attributes {dimension_semantics = [#tpu.dimension_semantics<parallel>], iteration_bounds = array<i64: 2>, scalar_prefetch = 0 : i64, scratch_operands = 0 : i64, tpu.core_type = #tpu.core_type<tc>, window_params = [{transform_indices = @transform_0, window_bounds = array<i64: 1, 64, 64>}, {pipeline_mode = #tpu.pipeline_mode<synchronous>, transform_indices = @transform_1, window_bounds = array<i64: 80, 64>}, {pipeline_mode = #tpu.pipeline_mode<synchronous>, transform_indices = @transform_2, window_bounds = array<i64: 80, 1>}, {transform_indices = @transform_3, window_bounds = array<i64: 1>}, {transform_indices = @transform_4, window_bounds = array<i64: 1, 64, 64>}, {transform_indices = @transform_5, window_bounds = array<i64: 1, 64, 64>}]} {
    %c0 = arith.constant 0 : index
    %c0_0 = arith.constant 0 : index
    %c0_1 = arith.constant 0 : index
    %0 = vector.load %arg1[%c0, %c0_0, %c0_1] : memref<1x64x64xf32, #tpu.memory_space<vmem>>, vector<1x64x64xf32>
    %1 = vector.shape_cast %0 : vector<1x64x64xf32> to vector<64x64xf32>
    %c0_2 = arith.constant 0 : index
    %c0_3 = arith.constant 0 : index
    %2 = vector.load %arg2[%c0_2, %c0_3] : memref<80x64xbf16, #tpu.memory_space<vmem>>, vector<80x64xbf16>
    %3 = arith.truncf %1 : vector<64x64xf32> to vector<64x64xbf16>
    %cst = arith.constant dense<0.000000e+00> : vector<80x64xf32>
    %4 = tpu.matmul %2, %3, %cst {dimension_numbers = #tpu.dot_dimension_numbers<[1], [0], [0], [1], [0, 0, 1, 1], [], []>} : vector<80x64xbf16>, vector<64x64xbf16>, vector<80x64xf32> -> vector<80x64xf32>
    %c0_4 = arith.constant 0 : index
    %c0_5 = arith.constant 0 : index
    %5 = vector.load %arg3[%c0_4, %c0_5] : memref<80x1xf32, #tpu.memory_space<vmem>>, vector<80x1xf32>
    %6 = vector.broadcast %5 : vector<80x1xf32> to vector<80x64xf32>
    %7 = arith.addf %4, %6 : vector<80x64xf32>
    %8 = vector.extract_strided_slice %7 {offsets = [0, 0], sizes = [8, 64], strides = [1, 1]} : vector<80x64xf32> to vector<8x64xf32>
    %9 = vector.extract_strided_slice %7 {offsets = [8, 0], sizes = [8, 64], strides = [1, 1]} : vector<80x64xf32> to vector<8x64xf32>
    %10 = vector.extract_strided_slice %7 {offsets = [16, 0], sizes = [64, 64], strides = [1, 1]} : vector<80x64xf32> to vector<64x64xf32>
    %cst_6 = arith.constant dense<0.000000e+00> : vector<64x64xf32>
    %11 = tpu.matmul %8, %9, %cst_6 {dimension_numbers = #tpu.dot_dimension_numbers<[0], [0], [1], [1], [0, 1, 1, 1], [], []>} : vector<8x64xf32>, vector<8x64xf32>, vector<64x64xf32> -> vector<64x64xf32>
    %cst_7 = arith.constant dense<0xFF800000> : vector<64xf32>
    %12 = vector.multi_reduction <maximumf>, %11, %cst_7 [1] : vector<64x64xf32> to vector<64xf32>
    %13 = vector.shape_cast %12 : vector<64xf32> to vector<64x1xf32>
    %14 = vector.broadcast %13 : vector<64x1xf32> to vector<64x64xf32>
    %15 = arith.subf %11, %14 : vector<64x64xf32>
    %16 = math.exp %15 : vector<64x64xf32>
    %cst_8 = arith.constant dense<0.000000e+00> : vector<64xf32>
    %17 = vector.multi_reduction <add>, %16, %cst_8 [1] : vector<64x64xf32> to vector<64xf32>
    %18 = vector.shape_cast %17 : vector<64xf32> to vector<64x1xf32>
    %19 = tpu.reciprocal %18 {approx = true} : vector<64x1xf32> -> vector<64x1xf32>
    %20 = vector.broadcast %19 : vector<64x1xf32> to vector<64x64xf32>
    %21 = arith.mulf %16, %20 : vector<64x64xf32>
    %22 = arith.truncf %10 : vector<64x64xf32> to vector<64x64xbf16>
    %23 = arith.truncf %21 : vector<64x64xf32> to vector<64x64xbf16>
    %cst_9 = arith.constant dense<0.000000e+00> : vector<64x64xf32>
    %24 = tpu.matmul %22, %23, %cst_9 {dimension_numbers = #tpu.dot_dimension_numbers<[1], [1], [0], [0], [0, 0, 1, 0], [], []>} : vector<64x64xbf16>, vector<64x64xbf16>, vector<64x64xf32> -> vector<64x64xf32>
    %c0_10 = arith.constant 0 : index
    %25 = memref.load %arg4[%c0_10] : memref<1xf32, #tpu.memory_space<smem>>
    %26 = vector.broadcast %25 : f32 to vector<64x64xf32>
    %27 = arith.mulf %26, %24 : vector<64x64xf32>
    %28 = arith.addf %27, %1 : vector<64x64xf32>
    %c0_11 = arith.constant 0 : index
    %c0_12 = arith.constant 0 : index
    %c0_13 = arith.constant 0 : index
    %29 = vector.load %arg5[%c0_11, %c0_12, %c0_13] : memref<1x64x64xf32, #tpu.memory_space<vmem>>, vector<1x64x64xf32>
    %30 = vector.shape_cast %29 : vector<1x64x64xf32> to vector<64x64xf32>
    %31 = vector.shape_cast %28 : vector<64x64xf32> to vector<1x64x64xf32>
    tpu.vector_store %arg5[%c0_11, %c0_12, %c0_13], %31 {strides = array<i32>} : memref<1x64x64xf32, #tpu.memory_space<vmem>>, vector<1x64x64xf32>,
    %c0_14 = arith.constant 0 : index
    %c0_15 = arith.constant 0 : index
    %c0_16 = arith.constant 0 : index
    %32 = vector.load %arg6[%c0_14, %c0_15, %c0_16] : memref<1x64x64xf32, #tpu.memory_space<vmem>>, vector<1x64x64xf32>
    %33 = vector.shape_cast %32 : vector<1x64x64xf32> to vector<64x64xf32>
    %34 = vector.shape_cast %21 : vector<64x64xf32> to vector<1x64x64xf32>
    tpu.vector_store %arg6[%c0_14, %c0_15, %c0_16], %34 {strides = array<i32>} : memref<1x64x64xf32, #tpu.memory_space<vmem>>, vector<1x64x64xf32>,
    return
  }
  func.func @transform_0(%arg0: i32) -> (i32, i32, i32) {
    %c0_i32 = arith.constant 0 : i32
    %c0_i32_0 = arith.constant 0 : i32
    %c0_i32_1 = arith.constant 0 : i32
    return %arg0, %c0_i32, %c0_i32_0 : i32, i32, i32
  }
  func.func @transform_1(%arg0: i32) -> (i32, i32) {
    %c0_i32 = arith.constant 0 : i32
    %c0_i32_0 = arith.constant 0 : i32
    %c0_i32_1 = arith.constant 0 : i32
    return %c0_i32, %c0_i32_0 : i32, i32
  }
  func.func @transform_2(%arg0: i32) -> (i32, i32) {
    %c0_i32 = arith.constant 0 : i32
    %c0_i32_0 = arith.constant 0 : i32
    %c0_i32_1 = arith.constant 0 : i32
    return %c0_i32, %c0_i32_0 : i32, i32
  }
  func.func @transform_3(%arg0: i32) -> i32 {
    %c0_i32 = arith.constant 0 : i32
    %c0_i32_0 = arith.constant 0 : i32
    return %c0_i32 : i32
  }
  func.func @transform_4(%arg0: i32) -> (i32, i32, i32) {
    %c0_i32 = arith.constant 0 : i32
    %c0_i32_0 = arith.constant 0 : i32
    %c0_i32_1 = arith.constant 0 : i32
    return %arg0, %c0_i32, %c0_i32_0 : i32, i32, i32
  }
  func.func @transform_5(%arg0: i32) -> (i32, i32, i32) {
    %c0_i32 = arith.constant 0 : i32
    %c0_i32_0 = arith.constant 0 : i32
    %c0_i32_1 = arith.constant 0 : i32
    return %arg0, %c0_i32, %c0_i32_0 : i32, i32, i32
  }
}

</mosaic_0001>

<llo_original>
// kernel: self_attention_1d.1
$region0: #{self_attention_1d.1}
  #allocation0 [shape = 'u32[]', space=smem, size = 0x4, offset = 0x4, fixed_abs, tag = 'smem constant byte address 0x4 - core index']
  #allocation1 [shape = 'u32[72,128]{1,0:T(1,128)}', space=vmem, size = 0x9000, scoped, tag = 'internal scratch']
  #allocation2 [shape = 'f32[1]{0:T(128)S(6)}', space=smem, size = 0x200, scoped, tag = 'scoped memory for self_attention_1d.1']
  %s0 = inlined_call_operand.vmem [shape: f32[2,64,64], index: 0, kind: input, shape index: {}]
  %s1 = inlined_call_operand.vmem [shape: bf16[80,64], index: 1, kind: input, shape index: {}]
  %s2 = inlined_call_operand.vmem [shape: f32[80,1], index: 2, kind: input, shape index: {}]
  %s3 = inlined_call_operand.<no memory space> [shape: f32[1], index: 3, kind: input, shape index: {}]
  %s4 = inlined_call_operand.hbm [shape: f32[2,64,64], index: 4, kind: output, shape index: {0}]
  %s5 = inlined_call_operand.hbm [shape: f32[2,64,64], index: 5, kind: output, shape index: {1}]
  %6 = xla_tuple %s4, %s5
  %s7 = sld [smem:[#allocation0]]
  $region57: #{self_attention_1d.1} parent=0
    _
  %s9 = ssub.s32 1, %s7
  %s10 = scalar_select 0, %s9, %s7
  %11 = sst [smem:[#allocation2]] %s3
  $region1: #{self_attention_1d.1} parent=0
    #allocation3 [shape = 'u8[65536]{0}', space=vmem, size = 0x10000, scoped, tag = 'output window, operand 0']
    #allocation4 [shape = 's32[2]{0}', space=sflag, size = 0x8, scoped, tag = 'scoped memory for self_attention_1d.1']
    #allocation5 [shape = 'u8[65536]{0}', space=vmem, size = 0x10000, scoped, tag = 'output window, operand 1']
    #allocation6 [shape = 's32[2]{0}', space=sflag, size = 0x8, scoped, tag = 'scoped memory for self_attention_1d.1']
    %12 = vsyncpa [#allocation4], 0
    %s13 = scalar_lea.sflag [#allocation4], 1
    %14 = vsyncpa %s13, 0
    %15 = vsyncpa [#allocation6], 0
    %s16 = scalar_lea.sflag [#allocation6], 1
    %17 = vsyncpa %s16, 0
    loop: start=0, step=1, limit=4
    $region2: #{self_attention_1d.1} parent=1 // loop_pre_header
      _
    $region3: #{self_attention_1d.1} parent=1 // loop_header
      %s19 = sphi 0, %s23
      %p20 = scmp.ge.s32.totalorder %s19, 4
      %s29 = sphi 0, %s31
      %s32 = sphi 0, %s29
      %s33 = sphi 0, %s32
      %s49 = sphi 0, %s33
      %s53 = sphi 0, %s53
      %s55 = sphi 0, %s53
      %s56 = sphi 0, %s55
      %s70 = sphi 0, %s56
      %s74 = sphi 0, %s74
      %s76 = sphi 0, %s74
      %s77 = sphi 0, %s76
      %s91 = sphi 0, %s77
      %s95 = sphi 0, %s95
      %s97 = sphi 0, %s95
      %s98 = sphi 0, %s97
      %s112 = sphi 0, %s98
      %s118 = sphi 0, %s120
      %s121 = sphi 0, %s118
      %s122 = sphi 0, %s121
      %s138 = sphi 0, %s122
      %s144 = sphi 0, %s146
      %s147 = sphi 0, %s144
      %s148 = sphi 0, %s147
      %s164 = sphi 0, %s148
    $region4: #{self_attention_1d.1} parent=1 // loop_header_branch
      %22 = sbr.rel (%p20) target = $region8
    $region5: #{self_attention_1d.1} parent=1 // loop_body
      %s24 = ssub.s32 %s19, 1
      %s25 = ssub.s32 %s19, 2
      %s26 = sadd.s32 %s19, 1
      %s27 = ssub.s32 %s19, %s26
      %p28 = scmp.eq.s32.totalorder %s27, 0
      %s30 = sadd.s32 %s29, 1
      %s31 = scalar_select %p28, %s29, %s30
      %p34 = pneg %p28
      %p35 = scmp.eq.s32.totalorder %s19, 1
      %p36 = por %p34, %p35
      %p37 = scmp.ne.s32.totalorder %s29, %s32
      %p38 = scmp.eq.s32.totalorder %s19, 0
      %p39 = por %p37, %p38
      %p40 = scmp.ne.s32.totalorder %s29, %s32
      %p41 = scmp.eq.s32.totalorder %s24, 1
      %p42 = por %p40, %p41
      %p43 = scmp.ne.s32.totalorder %s32, %s33
      %p44 = scmp.eq.s32.totalorder %s24, 0
      %p45 = por %p43, %p44
      %p46 = scmp.ne.s32.totalorder %s32, %s33
      %p47 = scmp.eq.s32.totalorder %s25, 1
      %p48 = por %p46, %p47
      %p50 = scmp.ne.s32.totalorder %s33, %s49
      %p51 = scmp.eq.s32.totalorder %s25, 0
      %p52 = por %p50, %p51
      %s54 = sadd.s32 %s53, 1
      %p57 = scmp.eq.s32.totalorder %s19, 1
      %p58 = scmp.ne.s32.totalorder %s53, %s55
      %p59 = scmp.eq.s32.totalorder %s19, 0
      %p60 = por %p58, %p59
      %p61 = scmp.ne.s32.totalorder %s53, %s55
      %p62 = scmp.eq.s32.totalorder %s24, 1
      %p63 = por %p61, %p62
      %p64 = scmp.ne.s32.totalorder %s55, %s56
      %p65 = scmp.eq.s32.totalorder %s24, 0
      %p66 = por %p64, %p65
      %p67 = scmp.ne.s32.totalorder %s55, %s56
      %p68 = scmp.eq.s32.totalorder %s25, 1
      %p69 = por %p67, %p68
      %p71 = scmp.ne.s32.totalorder %s56, %s70
      %p72 = scmp.eq.s32.totalorder %s25, 0
      %p73 = por %p71, %p72
      %s75 = sadd.s32 %s74, 1
      %p78 = scmp.eq.s32.totalorder %s19, 1
      %p79 = scmp.ne.s32.totalorder %s74, %s76
      %p80 = scmp.eq.s32.totalorder %s19, 0
      %p81 = por %p79, %p80
      %p82 = scmp.ne.s32.totalorder %s74, %s76
      %p83 = scmp.eq.s32.totalorder %s24, 1
      %p84 = por %p82, %p83
      %p85 = scmp.ne.s32.totalorder %s76, %s77
      %p86 = scmp.eq.s32.totalorder %s24, 0
      %p87 = por %p85, %p86
      %p88 = scmp.ne.s32.totalorder %s76, %s77
      %p89 = scmp.eq.s32.totalorder %s25, 1
      %p90 = por %p88, %p89
      %p92 = scmp.ne.s32.totalorder %s77, %s91
      %p93 = scmp.eq.s32.totalorder %s25, 0
      %p94 = por %p92, %p93
      %s96 = sadd.s32 %s95, 1
      %p99 = scmp.eq.s32.totalorder %s19, 1
      %p100 = scmp.ne.s32.totalorder %s95, %s97
      %p101 = scmp.eq.s32.totalorder %s19, 0
      %p102 = por %p100, %p101
      %p103 = scmp.ne.s32.totalorder %s95, %s97
      %p104 = scmp.eq.s32.totalorder %s24, 1
      %p105 = por %p103, %p104
      %p106 = scmp.ne.s32.totalorder %s97, %s98
      %p107 = scmp.eq.s32.totalorder %s24, 0
      %p108 = por %p106, %p107
      %p109 = scmp.ne.s32.totalorder %s97, %s98
      %p110 = scmp.eq.s32.totalorder %s25, 1
      %p111 = por %p109, %p110
      %p113 = scmp.ne.s32.totalorder %s98, %s112
      %p114 = scmp.eq.s32.totalorder %s25, 0
      %p115 = por %p113, %p114
      %s116 = ssub.s32 %s19, %s26
      %p117 = scmp.eq.s32.totalorder %s116, 0
      %s119 = sadd.s32 %s118, 1
      %s120 = scalar_select %p117, %s118, %s119
      %p123 = pneg %p117
      %p124 = scmp.eq.s32.totalorder %s19, 1
      %p125 = por %p123, %p124
      %p126 = scmp.ne.s32.totalorder %s118, %s121
      %p127 = scmp.eq.s32.totalorder %s19, 0
      %p128 = por %p126, %p127
      %p129 = scmp.ne.s32.totalorder %s118, %s121
      %p130 = scmp.eq.s32.totalorder %s24, 1
      %p131 = por %p129, %p130
      %p132 = scmp.ne.s32.totalorder %s121, %s122
      %p133 = scmp.eq.s32.totalorder %s24, 0
      %p134 = por %p132, %p133
      %p135 = scmp.ne.s32.totalorder %s121, %s122
      %p136 = scmp.eq.s32.totalorder %s25, 1
      %p137 = por %p135, %p136
      %p139 = scmp.ne.s32.totalorder %s122, %s138
      %p140 = scmp.eq.s32.totalorder %s25, 0
      %p141 = por %p139, %p140
      %s142 = ssub.s32 %s19, %s26
      %p143 = scmp.eq.s32.totalorder %s142, 0
      %s145 = sadd.s32 %s144, 1
      %s146 = scalar_select %p143, %s144, %s145
      %p149 = pneg %p143
      %p150 = scmp.eq.s32.totalorder %s19, 1
      %p151 = por %p149, %p150
      %p152 = scmp.ne.s32.totalorder %s144, %s147
      %p153 = scmp.eq.s32.totalorder %s19, 0
      %p154 = por %p152, %p153
      %p155 = scmp.ne.s32.totalorder %s144, %s147
      %p156 = scmp.eq.s32.totalorder %s24, 1
      %p157 = por %p155, %p156
      %p158 = scmp.ne.s32.totalorder %s147, %s148
      %p159 = scmp.eq.s32.totalorder %s24, 0
      %p160 = por %p158, %p159
      %p161 = scmp.ne.s32.totalorder %s147, %s148
      %p162 = scmp.eq.s32.totalorder %s25, 1
      %p163 = por %p161, %p162
      %p165 = scmp.ne.s32.totalorder %s148, %s164
      %p166 = scmp.eq.s32.totalorder %s25, 0
      %p167 = por %p165, %p166
      %p168 = scmp.le.s32.totalorder 1, %s19
      %p169 = scmp.lt.s32.totalorder %s19, 3
      %p170 = pnand %p168, %p169
      %p171 = pneg %p170
      // Predicated region
      $region9: #{self_attention_1d.1} parent=5 // pred_check
        _
      $region10: #{self_attention_1d.1} parent=5 // pred_check_branch
        %173 = sbr.rel (%p170) target = $region12
      $region11: #{self_attention_1d.1} parent=5 // pred_region
        %s174 = ssub.s32 %s19, 1
        // Predicated region
        $region13: #{self_attention_1d.1} parent=11 // pred_check
          %p175 = pneg %p66
        $region14: #{self_attention_1d.1} parent=11 // pred_check_branch
          %177 = sbr.rel (%p175) target = $region16
        $region15: #{self_attention_1d.1} parent=11 // pred_region
          _
        $region16: #{self_attention_1d.1} parent=11 // pred_fallthru
          _
        // Predicated region
        $region17: #{self_attention_1d.1} parent=11 // pred_check
          %p178 = pneg %p87
        $region18: #{self_attention_1d.1} parent=11 // pred_check_branch
          %180 = sbr.rel (%p178) target = $region20
        $region19: #{self_attention_1d.1} parent=11 // pred_region
          _
        $region20: #{self_attention_1d.1} parent=11 // pred_fallthru
          _
        // Predicated region
        $region21: #{self_attention_1d.1} parent=11 // pred_check
          %p181 = pneg %p108
        $region22: #{self_attention_1d.1} parent=11 // pred_check_branch
          %183 = sbr.rel (%p181) target = $region24
        $region23: #{self_attention_1d.1} parent=11 // pred_region
          _
        $region24: #{self_attention_1d.1} parent=11 // pred_fallthru
          _
      $region12: #{self_attention_1d.1} parent=5 // pred_fallthru
        _
      %p184 = scmp.lt.s32.totalorder %s19, 2
      // Predicated region
      $region25: #{self_attention_1d.1} parent=5 // pred_check
        %p185 = pneg %p184
      $region26: #{self_attention_1d.1} parent=5 // pred_check_branch
        %187 = sbr.rel (%p185) target = $region28
      $region27: #{self_attention_1d.1} parent=5 // pred_region
        // Predicated region
        $region29: #{self_attention_1d.1} parent=27 // pred_check
          %p188 = pneg %p39
        $region30: #{self_attention_1d.1} parent=27 // pred_check_branch
          %190 = sbr.rel (%p188) target = $region32
        $region31: #{self_attention_1d.1} parent=27 // pred_region
          %p191 = scmp.lt.s32.totalorder %s19, 1
          %s192 = scalar_select %p191, %s19, 1
          %s193 = smul.addr %s192, 8
          %s194 = smul.addr %s193, 8
          %s195 = scalar_lea.vmem %s0, %s194
        $region32: #{self_attention_1d.1} parent=27 // pred_fallthru
          _
      $region28: #{self_attention_1d.1} parent=5 // pred_fallthru
        _
      %p196 = scmp.le.s32.totalorder 1, %s19
      %p197 = scmp.lt.s32.totalorder %s19, 3
      %p198 = pnand %p196, %p197
      %p199 = pneg %p198
      // Predicated region
      $region33: #{self_attention_1d.1} parent=5 // pred_check
        _
      $region34: #{self_attention_1d.1} parent=5 // pred_check_branch
        %201 = sbr.rel (%p198) target = $region36
      $region35: #{self_attention_1d.1} parent=5 // pred_region
        %s202 = ssub.s32 %s19, 1
        %p203 = scmp.lt.s32.totalorder %s24, 1
        %s204 = scalar_select %p203, %s24, 1
        %s205 = smul.addr %s204, 8
        %s206 = smul.addr %s205, 8
        %s207 = scalar_lea.vmem %s0, %s206
        %p208 = pneg %p45
        %p209 = pneg %p42
        %p210 = pneg %p66
        %p211 = pneg %p63
        %p212 = pneg %p87
        %p213 = pneg %p84
        %p214 = pneg %p108
        %p215 = pneg %p105
        %p216 = pneg %p134
        %p217 = pneg %p131
        %s218 = sand.u32 %s121, 1
        %s219 = scalar_lea.sflag [#allocation4], %s218
        %s220 = sand.u32 %s121, 1
        %s221 = smul.addr %s220, 64
        %s222 = scalar_lea.vmem [#allocation3], %s221
        %p223 = pneg %p160
        %p224 = pneg %p157
        %s225 = sand.u32 %s147, 1
        %s226 = scalar_lea.sflag [#allocation6], %s225
        %s227 = sand.u32 %s147, 1
        %s228 = smul.addr %s227, 64
        %s229 = scalar_lea.vmem [#allocation5], %s228
        %p230 = scmp.lt.s32.totalorder %s24, 1
        %s231 = scalar_select %p230, %s24, 1
        %s232 = smul.addr %s231, 8
        %s233 = smul.addr %s232, 8
        %s234 = scalar_lea.vmem %s0, %s233
        %v236 = vld [vmem:[%s234] sm:$0xff]
        %v237 = vld [vmem:[%s234 + $0x8] sm:$0xff]
        %v238 = vld [vmem:[%s234 + $0x10] sm:$0xff]
        %v239 = vld [vmem:[%s234 + $0x18] sm:$0xff]
        %v240 = vld [vmem:[%s234 + $0x20] sm:$0xff]
        %v241 = vld [vmem:[%s234 + $0x28] sm:$0xff]
        %v242 = vld [vmem:[%s234 + $0x30] sm:$0xff]
        %v243 = vld [vmem:[%s234 + $0x38] sm:$0xff]
        %v244 = vld [vmem:[%s1] sm:$0xf]
        %v245 = vld [vmem:[%s1 + $0x4] sm:$0xf]
        %v246 = vld [vmem:[%s1 + $0x8] sm:$0xf]
        %v247 = vld [vmem:[%s1 + $0xc] sm:$0xf]
        %v248 = vld [vmem:[%s1 + $0x10] sm:$0xf]
        %v249 = vld [vmem:[%s1 + $0x14] sm:$0xf]
        %v250 = vld [vmem:[%s1 + $0x18] sm:$0xf]
        %v251 = vld [vmem:[%s1 + $0x1c] sm:$0xf]
        %v252 = vld [vmem:[%s1 + $0x20] sm:$0xf]
        %v253 = vld [vmem:[%s1 + $0x24] sm:$0xf]
        %v254 = vpack.c.bf16 %v237, %v236
        %v255 = vpack.c.bf16 %v239, %v238
        %v256 = vpack.c.bf16 %v241, %v240
        %v257 = vpack.c.bf16 %v243, %v242
        %v258 = vld [vmem:[%s2] sm:$0xff]
        %v259 = vld [vmem:[%s2 + $0x8] sm:$0xff]
        %v260 = vld [vmem:[%s2 + $0x10] sm:$0xff]
        %v261 = vld [vmem:[%s2 + $0x18] sm:$0xff]
        %v262 = vld [vmem:[%s2 + $0x20] sm:$0xff]
        %v263 = vld [vmem:[%s2 + $0x28] sm:$0xff]
        %v264 = vld [vmem:[%s2 + $0x30] sm:$0xff]
        %v265 = vld [vmem:[%s2 + $0x38] sm:$0xff]
        %v266 = vld [vmem:[%s2 + $0x40] sm:$0xff]
        %v267 = vld [vmem:[%s2 + $0x48] sm:$0xff]
        %269 = vset.pattern.permute.xlu0 0
        %270 = vperm.xlu0 %269, %v258
        %v271 = vpop.permute.xlu0 %270
        %274 = vset.pattern.permute.xlu0 0
        %275 = vperm.xlu0 %274, %v259
        %v276 = vpop.permute.xlu0 %275
        %279 = vset.pattern.permute.xlu0 0
        %280 = vperm.xlu0 %279, %v260
        %v281 = vpop.permute.xlu0 %280
        %284 = vset.pattern.permute.xlu0 0
        %285 = vperm.xlu0 %284, %v261
        %v286 = vpop.permute.xlu0 %285
        %289 = vset.pattern.permute.xlu0 0
        %290 = vperm.xlu0 %289, %v262
        %v291 = vpop.permute.xlu0 %290
        %294 = vset.pattern.permute.xlu0 0
        %295 = vperm.xlu0 %294, %v263
        %v296 = vpop.permute.xlu0 %295
        %299 = vset.pattern.permute.xlu0 0
        %300 = vperm.xlu0 %299, %v264
        %v301 = vpop.permute.xlu0 %300
        %304 = vset.pattern.permute.xlu0 0
        %305 = vperm.xlu0 %304, %v265
        %v306 = vpop.permute.xlu0 %305
        %309 = vset.pattern.permute.xlu0 0
        %310 = vperm.xlu0 %309, %v266
        %v311 = vpop.permute.xlu0 %310
        %314 = vset.pattern.permute.xlu0 0
        %315 = vperm.xlu0 %314, %v267
        %v316 = vpop.permute.xlu0 %315
        %v328 = vunpack.c.l.b16 %v244
        %v329 = vunpack.c.l.b16 %v245
        %v330 = vunpack.c.l.b16 %v246
        %v331 = vunpack.c.l.b16 %v247
        %v332 = vunpack.c.l.b16 %v248
        %v333 = vunpack.c.l.b16 %v249
        %v334 = vunpack.c.l.b16 %v250
        %v335 = vunpack.c.l.b16 %v251
        %v336 = vunpack.c.l.b16 %v252
        %v337 = vunpack.c.l.b16 %v253
        %v338 = vpack.c.b16 %v329, %v328
        %v339 = vpack.c.b16 %v331, %v330
        %v340 = vpack.c.b16 %v333, %v332
        %v341 = vpack.c.b16 %v335, %v334
        %v342 = vpack.c.b16 %v337, %v336
        %vm343 = vcmask 523264
        %v345 = vsel %vm343, %v338, 0
        %v348 = vsel %vm343, %v339, 0
        %v351 = vsel %vm343, %v340, 0
        %v354 = vsel %vm343, %v341, 0
        %v357 = vsel %vm343, %v342, 0
        %359 = vmatpush.bf16.msra.mxu0 0
        %360 = vmatpush.bf16.msra.mxu0 0
        %361 = vmatpush.bf16.msra.mxu0 0
        %362 = vmatpush.bf16.msra.mxu0 0
        %363 = vmatpush.bf16.msra.mxu0 %v257
        %364 = vmatpush.bf16.msra.mxu0 %v256
        %365 = vmatpush.bf16.msra.mxu0 %v255
        %366 = vmatpush.bf16.msra.mxu0 %v254
        %367 = vmatmul.bf16.gmra.mxu0 %v345
        %v368 = vpop.f32.mrf.mxu0
        %v369 = vadd.f32 %v271, %v368
        %v370 = vpop.f32.mrf.mxu0
        %v371 = vadd.f32 %v276, %v370
        %372 = vmatmul.bf16.gmra.mxu0 %v348
        %v373 = vpop.f32.mrf.mxu0
        %v374 = vadd.f32 %v281, %v373
        %v375 = vpop.f32.mrf.mxu0
        %v376 = vadd.f32 %v286, %v375
        %377 = vmatmul.bf16.gmra.mxu0 %v351
        %v378 = vpop.f32.mrf.mxu0
        %v379 = vadd.f32 %v291, %v378
        %v380 = vpop.f32.mrf.mxu0
        %v381 = vadd.f32 %v296, %v380
        %382 = vmatmul.bf16.gmra.mxu0 %v354
        %v383 = vpop.f32.mrf.mxu0
        %v384 = vadd.f32 %v301, %v383
        %v385 = vpop.f32.mrf.mxu0
        %v386 = vadd.f32 %v306, %v385
        %387 = vmatmul.bf16.gmra.mxu0 %v357
        %v388 = vpop.f32.mrf.mxu0
        %v389 = vadd.f32 %v311, %v388
        %v390 = vpop.f32.mrf.mxu0
        %v391 = vadd.f32 %v316, %v390
        %392 = vdwg.mxu0
        %393 = vxpose.xlu0.b32.start [1/16] %v369, 128
        %394 = vxpose.xlu0.b32.cont [2/16] 0.0, 128
        %395 = vxpose.xlu0.b32.cont [3/16] 0.0, 128
        %396 = vxpose.xlu0.b32.cont [4/16] 0.0, 128
        %397 = vxpose.xlu0.b32.cont [5/16] 0.0, 128
        %398 = vxpose.xlu0.b32.cont [6/16] 0.0, 128
        %399 = vxpose.xlu0.b32.cont [7/16] 0.0, 128
        %400 = vxpose.xlu0.b32.cont [8/16] 0.0, 128
        %401 = vxpose.xlu0.b32.cont [9/16] 0.0, 128
        %402 = vxpose.xlu0.b32.cont [10/16] 0.0, 128
        %403 = vxpose.xlu0.b32.cont [11/16] 0.0, 128
        %404 = vxpose.xlu0.b32.cont [12/16] 0.0, 128
        %405 = vxpose.xlu0.b32.cont [13/16] 0.0, 128
        %406 = vxpose.xlu0.b32.cont [14/16] 0.0, 128
        %407 = vxpose.xlu0.b32.cont [15/16] 0.0, 128
        %408 = vxpose.xlu0.b32.end [16/16] 0.0, 128
        %v409 = vpop.trf.xlu0
        %v410 = vpop.trf.xlu0
        %v411 = vpop.trf.xlu0
        %v412 = vpop.trf.xlu0
        %v413 = vpop.trf.xlu0
        %v414 = vpop.trf.xlu0
        %v415 = vpop.trf.xlu0
        %v416 = vpop.trf.xlu0
        %v417 = vpop.trf.xlu0
        %v418 = vpop.trf.xlu0
        %v419 = vpop.trf.xlu0
        %v420 = vpop.trf.xlu0
        %v421 = vpop.trf.xlu0
        %v422 = vpop.trf.xlu0
        %v423 = vpop.trf.xlu0
        %v424 = vpop.trf.xlu0
        %vm425 = vcmask 64512
        %v427 = vsel %vm425, %v409, 0
        %v430 = vsel %vm425, %v410, 0
        %v433 = vsel %vm425, %v411, 0
        %v436 = vsel %vm425, %v412, 0
        %v439 = vsel %vm425, %v413, 0
        %v442 = vsel %vm425, %v414, 0
        %v445 = vsel %vm425, %v415, 0
        %v448 = vsel %vm425, %v416, 0
        %450 = vmatpush.msra.mxu0 0.0
        %451 = vmatpush.msra.mxu0 0.0
        %452 = vmatpush.msra.mxu0 0.0
        %453 = vmatpush.msra.mxu0 0.0
        %454 = vmatpush.msra.mxu0 0.0
        %455 = vmatpush.msra.mxu0 0.0
        %456 = vmatpush.msra.mxu0 0.0
        %457 = vmatpush.msra.mxu0 0.0
        %458 = vmatpush.msra.mxu0 0.0
        %459 = vmatpush.msra.mxu0 0.0
        %460 = vmatpush.msra.mxu0 0.0
        %461 = vmatpush.msra.mxu0 0.0
        %462 = vmatpush.msra.mxu0 0.0
        %463 = vmatpush.msra.mxu0 0.0
        %464 = vmatpush.msra.mxu0 0.0
        %465 = vmatpush.msra.mxu0 %v371
        %466 = vmatmul.f32.gmra.mxu0 %v427
        %v467 = vpop.f32.mrf.mxu0
        %v468 = vadd.f32 0.0, %v467
        %469 = vmatmul.f32.gmra.mxu0 %v430
        %v470 = vpop.f32.mrf.mxu0
        %v471 = vadd.f32 0.0, %v470
        %472 = vmatmul.f32.gmra.mxu0 %v433
        %v473 = vpop.f32.mrf.mxu0
        %v474 = vadd.f32 0.0, %v473
        %475 = vmatmul.f32.gmra.mxu0 %v436
        %v476 = vpop.f32.mrf.mxu0
        %v477 = vadd.f32 0.0, %v476
        %478 = vmatmul.f32.gmra.mxu0 %v439
        %v479 = vpop.f32.mrf.mxu0
        %v480 = vadd.f32 0.0, %v479
        %481 = vmatmul.f32.gmra.mxu0 %v442
        %v482 = vpop.f32.mrf.mxu0
        %v483 = vadd.f32 0.0, %v482
        %484 = vmatmul.f32.gmra.mxu0 %v445
        %v485 = vpop.f32.mrf.mxu0
        %v486 = vadd.f32 0.0, %v485
        %487 = vmatmul.f32.gmra.mxu0 %v448
        %v488 = vpop.f32.mrf.mxu0
        %v489 = vadd.f32 0.0, %v488
        %490 = vdwg.mxu0
        %v491 = vsel %vm343, %v468, -inf
        %492 = vmax.xlane.f32.xlu0 %v491
        %v493 = vpop.xlane.xlu0 %492
        %v494 = vsel %vm343, %v471, -inf
        %495 = vmax.xlane.f32.xlu0 %v494
        %v496 = vpop.xlane.xlu0 %495
        %v497 = vsel %vm343, %v474, -inf
        %498 = vmax.xlane.f32.xlu0 %v497
        %v499 = vpop.xlane.xlu0 %498
        %v500 = vsel %vm343, %v477, -inf
        %501 = vmax.xlane.f32.xlu0 %v500
        %v502 = vpop.xlane.xlu0 %501
        %v503 = vsel %vm343, %v480, -inf
        %504 = vmax.xlane.f32.xlu0 %v503
        %v505 = vpop.xlane.xlu0 %504
        %v506 = vsel %vm343, %v483, -inf
        %507 = vmax.xlane.f32.xlu0 %v506
        %v508 = vpop.xlane.xlu0 %507
        %v509 = vsel %vm343, %v486, -inf
        %510 = vmax.xlane.f32.xlu0 %v509
        %v511 = vpop.xlane.xlu0 %510
        %v512 = vsel %vm343, %v489, -inf
        %513 = vmax.xlane.f32.xlu0 %v512
        %v514 = vpop.xlane.xlu0 %513
        %v515 = vsub.f32 %v468, %v493
        %v516 = vsub.f32 %v471, %v496
        %v517 = vsub.f32 %v474, %v499
        %v518 = vsub.f32 %v477, %v502
        %v519 = vsub.f32 %v480, %v505
        %v520 = vsub.f32 %v483, %v508
        %v521 = vsub.f32 %v486, %v511
        %v522 = vsub.f32 %v489, %v514
        %v523 = vmul.f32 %v515, 1.442695
        %v524 = vpow.pop %v523
        %v525 = vmul.f32 %v516, 1.442695
        %v526 = vpow.pop %v525
        %v527 = vmul.f32 %v517, 1.442695
        %v528 = vpow.pop %v527
        %v529 = vmul.f32 %v518, 1.442695
        %v530 = vpow.pop %v529
        %v531 = vmul.f32 %v519, 1.442695
        %v532 = vpow.pop %v531
        %v533 = vmul.f32 %v520, 1.442695
        %v534 = vpow.pop %v533
        %v535 = vmul.f32 %v521, 1.442695
        %v536 = vpow.pop %v535
        %v537 = vmul.f32 %v522, 1.442695
        %v538 = vpow.pop %v537
        %v539 = vsel %vm343, %v524, 0.0
        %540 = vadd.xlane.f32.xlu0 %v539
        %v541 = vpop.xlane.xlu0 %540
        %v542 = vsel %vm343, %v526, 0.0
        %543 = vadd.xlane.f32.xlu0 %v542
        %v544 = vpop.xlane.xlu0 %543
        %v545 = vsel %vm343, %v528, 0.0
        %546 = vadd.xlane.f32.xlu0 %v545
        %v547 = vpop.xlane.xlu0 %546
        %v548 = vsel %vm343, %v530, 0.0
        %549 = vadd.xlane.f32.xlu0 %v548
        %v550 = vpop.xlane.xlu0 %549
        %v551 = vsel %vm343, %v532, 0.0
        %552 = vadd.xlane.f32.xlu0 %v551
        %v553 = vpop.xlane.xlu0 %552
        %v554 = vsel %vm343, %v534, 0.0
        %555 = vadd.xlane.f32.xlu0 %v554
        %v556 = vpop.xlane.xlu0 %555
        %v557 = vsel %vm343, %v536, 0.0
        %558 = vadd.xlane.f32.xlu0 %v557
        %v559 = vpop.xlane.xlu0 %558
        %v560 = vsel %vm343, %v538, 0.0
        %561 = vadd.xlane.f32.xlu0 %v560
        %v562 = vpop.xlane.xlu0 %561
        %v563 = vrcp.pop %v541
        %v564 = vrcp.pop %v544
        %v565 = vrcp.pop %v547
        %v566 = vrcp.pop %v550
        %v567 = vrcp.pop %v553
        %v568 = vrcp.pop %v556
        %v569 = vrcp.pop %v559
        %v570 = vrcp.pop %v562
        %v571 = vmul.f32 %v524, %v563
        %v572 = vmul.f32 %v526, %v564
        %v573 = vmul.f32 %v528, %v565
        %v574 = vmul.f32 %v530, %v566
        %v575 = vmul.f32 %v532, %v567
        %v576 = vmul.f32 %v534, %v568
        %v577 = vmul.f32 %v536, %v569
        %v578 = vmul.f32 %v538, %v570
        %v579 = vpack.c.bf16 %v376, %v374
        %v580 = vpack.c.bf16 %v381, %v379
        %v581 = vpack.c.bf16 %v386, %v384
        %v582 = vpack.c.bf16 %v391, %v389
        %v583 = vpack.c.bf16 %v572, %v571
        %v584 = vpack.c.bf16 %v574, %v573
        %v585 = vpack.c.bf16 %v576, %v575
        %v586 = vpack.c.bf16 %v578, %v577
        %v588 = vsel %vm343, %v579, 0
        %v591 = vsel %vm343, %v580, 0
        %v594 = vsel %vm343, %v581, 0
        %v597 = vsel %vm343, %v582, 0
        %v600 = vsel %vm343, %v583, 0
        %v603 = vsel %vm343, %v584, 0
        %v606 = vsel %vm343, %v585, 0
        %v609 = vsel %vm343, %v586, 0
        %611 = vmatpush.bf16.xpose.msra.mxu0 0
        %612 = vmatpush.bf16.xpose.msra.mxu0 0
        %613 = vmatpush.bf16.xpose.msra.mxu0 0
        %614 = vmatpush.bf16.xpose.msra.mxu0 0
        %615 = vmatpush.bf16.xpose.msra.mxu0 %v609
        %616 = vmatpush.bf16.xpose.msra.mxu0 %v606
        %617 = vmatpush.bf16.xpose.msra.mxu0 %v603
        %618 = vmatpush.bf16.xpose.msra.mxu0 %v600
        %619 = vmatmul.bf16.gmra.mxu0 %v588
        %v620 = vpop.f32.mrf.mxu0
        %v621 = vadd.f32 0.0, %v620
        %v622 = vpop.f32.mrf.mxu0
        %v623 = vadd.f32 0.0, %v622
        %624 = vmatmul.bf16.gmra.mxu0 %v591
        %v625 = vpop.f32.mrf.mxu0
        %v626 = vadd.f32 0.0, %v625
        %v627 = vpop.f32.mrf.mxu0
        %v628 = vadd.f32 0.0, %v627
        %629 = vmatmul.bf16.gmra.mxu0 %v594
        %v630 = vpop.f32.mrf.mxu0
        %v631 = vadd.f32 0.0, %v630
        %v632 = vpop.f32.mrf.mxu0
        %v633 = vadd.f32 0.0, %v632
        %634 = vmatmul.bf16.gmra.mxu0 %v597
        %v635 = vpop.f32.mrf.mxu0
        %v636 = vadd.f32 0.0, %v635
        %v637 = vpop.f32.mrf.mxu0
        %v638 = vadd.f32 0.0, %v637
        %639 = vdwg.mxu0
        %s640 = sld [smem:[#allocation2]]
        %v641 = vstv %s640
        %v642 = vmul.f32 %v641, %v621
        %v643 = vmul.f32 %v641, %v623
        %v644 = vmul.f32 %v641, %v626
        %v645 = vmul.f32 %v641, %v628
        %v646 = vmul.f32 %v641, %v631
        %v647 = vmul.f32 %v641, %v633
        %v648 = vmul.f32 %v641, %v636
        %v649 = vmul.f32 %v641, %v638
        %v650 = vadd.f32 %v642, %v236
        %v651 = vadd.f32 %v643, %v237
        %v652 = vadd.f32 %v644, %v238
        %v653 = vadd.f32 %v645, %v239
        %v654 = vadd.f32 %v646, %v240
        %v655 = vadd.f32 %v647, %v241
        %v656 = vadd.f32 %v648, %v242
        %v657 = vadd.f32 %v649, %v243
        %658 = vst.msk [vmem:[%s222] sm:$0xff] %vm343, %v650
        %659 = vst.msk [vmem:[%s222 + $0x8] sm:$0xff] %vm343, %v651
        %660 = vst.msk [vmem:[%s222 + $0x10] sm:$0xff] %vm343, %v652
        %661 = vst.msk [vmem:[%s222 + $0x18] sm:$0xff] %vm343, %v653
        %662 = vst.msk [vmem:[%s222 + $0x20] sm:$0xff] %vm343, %v654
        %663 = vst.msk [vmem:[%s222 + $0x28] sm:$0xff] %vm343, %v655
        %664 = vst.msk [vmem:[%s222 + $0x30] sm:$0xff] %vm343, %v656
        %665 = vst.msk [vmem:[%s222 + $0x38] sm:$0xff] %vm343, %v657
        %666 = vst.msk [vmem:[%s229] sm:$0xff] %vm343, %v571
        %667 = vst.msk [vmem:[%s229 + $0x8] sm:$0xff] %vm343, %v572
        %668 = vst.msk [vmem:[%s229 + $0x10] sm:$0xff] %vm343, %v573
        %669 = vst.msk [vmem:[%s229 + $0x18] sm:$0xff] %vm343, %v574
        %670 = vst.msk [vmem:[%s229 + $0x20] sm:$0xff] %vm343, %v575
        %671 = vst.msk [vmem:[%s229 + $0x28] sm:$0xff] %vm343, %v576
        %672 = vst.msk [vmem:[%s229 + $0x30] sm:$0xff] %vm343, %v577
        %673 = vst.msk [vmem:[%s229 + $0x38] sm:$0xff] %vm343, %v578
        %s674 = sand.u32 %s121, 1
        %s675 = scalar_lea.sflag [#allocation4], %s674
        %s676 = sand.u32 %s121, 1
        %s677 = smul.addr %s676, 64
        %s678 = scalar_lea.vmem [#allocation3], %s677
        %s679 = sand.u32 %s147, 1
        %s680 = scalar_lea.sflag [#allocation6], %s679
        %s681 = sand.u32 %s147, 1
        %s682 = smul.addr %s681, 64
        %s683 = scalar_lea.vmem [#allocation5], %s682
        // Predicated region
        $region37: #{self_attention_1d.1} parent=35 // pred_check
          %p684 = pneg %p131
        $region38: #{self_attention_1d.1} parent=35 // pred_check_branch
          %686 = sbr.rel (%p684) target = $region40
        $region39: #{self_attention_1d.1} parent=35 // pred_region
          %688 = vsyncadd %s675, 0
          %s689 = smul.addr %s24, 8
          %s690 = smul.addr %s689, 8
          %s691 = scalar_lea.hbm %s4, %s690
          %s692 = sshll.u32 %s678, 4
          %s693 = int_to_ptr.vmem [resolvable:$true] %s692
          %s694 = sshll.u32 %s691, 4
          %s695 = int_to_ptr.hbm [resolvable:$true] %s694
          %700 = dma.vmem_to_hbm [thread:$0]  %s693, 1024, %s695, %s675, 128, 128, 8
        $region40: #{self_attention_1d.1} parent=35 // pred_fallthru
          _
        // Predicated region
        $region41: #{self_attention_1d.1} parent=35 // pred_check
          %p701 = pneg %p157
        $region42: #{self_attention_1d.1} parent=35 // pred_check_branch
          %703 = sbr.rel (%p701) target = $region44
        $region43: #{self_attention_1d.1} parent=35 // pred_region
          %705 = vsyncadd %s680, 0
          %s706 = smul.addr %s24, 8
          %s707 = smul.addr %s706, 8
          %s708 = scalar_lea.hbm %s5, %s707
          %s709 = sshll.u32 %s683, 4
          %s710 = int_to_ptr.vmem [resolvable:$true] %s709
          %s711 = sshll.u32 %s708, 4
          %s712 = int_to_ptr.hbm [resolvable:$true] %s711
          %717 = dma.vmem_to_hbm [thread:$0]  %s710, 1024, %s712, %s680, 128, 128, 8
        $region44: #{self_attention_1d.1} parent=35 // pred_fallthru
          _
      $region36: #{self_attention_1d.1} parent=5 // pred_fallthru
        _
      %p718 = scmp.le.s32.totalorder 2, %s19
      // Predicated region
      $region45: #{self_attention_1d.1} parent=5 // pred_check
        %p719 = pneg %p718
      $region46: #{self_attention_1d.1} parent=5 // pred_check_branch
        %721 = sbr.rel (%p719) target = $region48
      $region47: #{self_attention_1d.1} parent=5 // pred_region
        %s722 = ssub.s32 %s19, 2
        // Predicated region
        $region49: #{self_attention_1d.1} parent=47 // pred_check
          %p723 = pneg %p137
        $region50: #{self_attention_1d.1} parent=47 // pred_check_branch
          %725 = sbr.rel (%p723) target = $region52
        $region51: #{self_attention_1d.1} parent=47 // pred_region
          %s726 = sand.u32 %s122, 1
          %s727 = scalar_lea.sflag [#allocation4], %s726
          %s728 = sand.u32 %s122, 1
          %s729 = smul.addr %s728, 64
          %s730 = scalar_lea.vmem [#allocation3], %s729
          %732 = dma.done %s727, 1024
        $region52: #{self_attention_1d.1} parent=47 // pred_fallthru
          _
        // Predicated region
        $region53: #{self_attention_1d.1} parent=47 // pred_check
          %p733 = pneg %p163
        $region54: #{self_attention_1d.1} parent=47 // pred_check_branch
          %735 = sbr.rel (%p733) target = $region56
        $region55: #{self_attention_1d.1} parent=47 // pred_region
          %s736 = sand.u32 %s148, 1
          %s737 = scalar_lea.sflag [#allocation6], %s736
          %s738 = sand.u32 %s148, 1
          %s739 = smul.addr %s738, 64
          %s740 = scalar_lea.vmem [#allocation5], %s739
          %742 = dma.done %s737, 1024
        $region56: #{self_attention_1d.1} parent=47 // pred_fallthru
          _
      $region48: #{self_attention_1d.1} parent=5 // pred_fallthru
        _
    $region6: #{self_attention_1d.1} parent=1 // loop_footer
      %s23 = sadd.s32 1, %s19
    $region7: #{self_attention_1d.1} parent=1 // loop_footer_branch
      %18 = sbr.rel target = $region3
    $region8: #{self_attention_1d.1} parent=1 // loop_exit
      _
    %743 = vsyncpa [#allocation4], 1
    %s744 = scalar_lea.sflag [#allocation4], 1
    %745 = vsyncpa %s744, 1
    %746 = vsyncpa [#allocation6], 1
    %s747 = scalar_lea.sflag [#allocation6], 1
    %748 = vsyncpa %s747, 1

</llo_original>
